<compile_context>
chip_gen: v5e
topology: v5e:2x2
jax: 0.10.0
libtpu: 0.0.40
codegen_flags: <defaults>
</compile_context>

<pallas_src>
import functools

import jax
import jax.numpy as jnp
from jax.experimental import pallas as pl
from jax.experimental.pallas import tpu as pltpu

_OUT_DTYPE = jnp.bfloat16  # activations leave the kernel in bf16 (HBM-bound)


def _round_up(n, m):
    return ((n + m - 1) // m) * m


# ----------------------------------------------------------------------------
# Pallas kernel: fused chain of num_blocks x (y = relu(x @ W_i + b_i))
# over one row tile.  Weights/biases are whole-array VMEM-resident refs.
# ----------------------------------------------------------------------------
def _block_chain_kernel(x_ref, w_ref, b_ref, o_ref, *, num_blocks):
    # x_ref: (TM, D) f32   w_ref: (nb, D, D) bf16   b_ref: (nb, 1, D) f32
    h = x_ref[...]
    for blk in range(num_blocks):  # static unroll; num_blocks is small
        y = jnp.dot(h.astype(jnp.bfloat16), w_ref[blk],
                    preferred_element_type=jnp.float32)   # MXU, f32 accumulate
        h = jnp.maximum(y + b_ref[blk], 0.0)               # f32 epilogue (v5e-safe)
    o_ref[...] = h.astype(o_ref.dtype)                      # store bf16


def _choose_row_tile(n, tm):
    """8-aligned row tile <= tm; split into >=2 tiles when there is enough
    work so the 'parallel' grid axis can feed both v7x TensorCores."""
    tile = min(tm, _round_up(n, 8))
    if n > 256 and pl.cdiv(n, tile) < 2:
        tile = max(128, _round_up(pl.cdiv(n, 2), 8))
    return tile


def _fused_block_chain(x, w_stack, b_stack, *, tm=1024):
    """Applies the full Linear+ReLU chain to x in a single pallas_call.

    x       : (N, D)  activations, D a multiple of 128 (lane-dense)
    w_stack : (nb, D, D) bf16 weights (VMEM-resident across the row grid)
    b_stack : (nb, 1, D) f32 biases
    returns : (N, D) bf16
    """
    n, d = x.shape
    nb = w_stack.shape[0]

    tile_m = _choose_row_tile(n, tm)
    grid_m = pl.cdiv(n, tile_m)          # partial last tile handled by Pallas
                                         # (no wrapper pad, no output slice)

    bytes_accessed = (n * d * x.dtype.itemsize                 # activation in
                      + n * d * jnp.dtype(_OUT_DTYPE).itemsize  # activation out
                      + w_stack.size * w_stack.dtype.itemsize   # resident weights
                      + b_stack.size * b_stack.dtype.itemsize)  # resident biases
    cost = pl.CostEstimate(flops=2 * nb * n * d * d,
                           transcendentals=0,
                           bytes_accessed=bytes_accessed)

    return pl.pallas_call(
        functools.partial(_block_chain_kernel, num_blocks=nb),
        out_shape=jax.ShapeDtypeStruct((n, d), _OUT_DTYPE),
        grid_spec=pltpu.PrefetchScalarGridSpec(
            num_scalar_prefetch=0,
            grid=(grid_m,),
            in_specs=[
                # activation stream: tiled over rows, double-buffered
                pl.BlockSpec((tile_m, d), lambda i: (i, 0)),
                # weights / biases: constant index map -> fetched once, resident
                pl.BlockSpec((nb, d, d), lambda i: (0, 0, 0)),
                pl.BlockSpec((nb, 1, d), lambda i: (0, 0, 0)),
            ],
            out_specs=pl.BlockSpec((tile_m, d), lambda i: (i, 0)),
        ),
        compiler_params=pltpu.CompilerParams(
            # Independent row tiles: sharded across the 2 TensorCores on v7x.
            dimension_semantics=("parallel",),
        ),
        cost_estimate=cost,
    )(x, w_stack, b_stack)


# Single-branch entry point (used if only surface or only graph is given).
_single_branch = jax.jit(_fused_block_chain, static_argnames=("tm",))


# Both branches in one jitted program -> one host dispatch.  NOTE: the two
# pallas_calls serialize on the TensorCore; they are kept separate (rather
# than fused into one call) so each keeps a 'parallel' row grid for v7x.
@functools.partial(jax.jit, static_argnames=("tm",))
def _encoder_forward(surface, graph, w_surf, b_surf, w_graph, b_graph, tm=1024):
    s = _fused_block_chain(surface, w_surf, b_surf, tm=tm)
    g = _fused_block_chain(graph, w_graph, b_graph, tm=tm)
    return s, g


# ----------------------------------------------------------------------------
# ProteinEncoder: sequential blocks over (surface, graph)
# ----------------------------------------------------------------------------
class ProteinEncoder:
    """JAX/Pallas counterpart of atomsurf ProteinEncoder with synthetic blocks."""

    def __init__(self, num_blocks, hidden, key):
        assert hidden % 128 == 0, "keep the feature dim lane-dense (multiple of 128)"
        k_ws, k_bs, k_wg, k_bg = jax.random.split(key, 4)
        scale = 1.0 / jnp.sqrt(jnp.float32(hidden))
        # Stacked weights (nb, D, D) in bf16 for the MXU; biases in f32.
        self.w_surf = (jax.random.normal(k_ws, (num_blocks, hidden, hidden),
                                         jnp.float32) * scale).astype(jnp.bfloat16)
        self.b_surf = jax.random.normal(k_bs, (num_blocks, 1, hidden),
                                        jnp.float32) * 0.01
        self.w_graph = (jax.random.normal(k_wg, (num_blocks, hidden, hidden),
                                          jnp.float32) * scale).astype(jnp.bfloat16)
        self.b_graph = jax.random.normal(k_bg, (num_blocks, 1, hidden),
                                         jnp.float32) * 0.01

    def __call__(self, surface=None, graph=None):
        # Mirrors: for block in self.blocks: surface, graph = block(surface, graph)
        if surface is not None and graph is not None:
            return _encoder_forward(surface, graph,
                                    self.w_surf, self.b_surf,
                                    self.w_graph, self.b_graph)
        if surface is not None:
            return (_single_branch(surface, self.w_surf, self.b_surf), None)
        if graph is not None:
            return (None, _single_branch(graph, self.w_graph, self.b_graph))
        return (None, None)


if __name__ == "__main__":
    key = jax.random.PRNGKey(0)
    k_surf, k_graph, k_params = jax.random.split(key, 3)

    n_surface_nodes = 500   # non-multiple of the tile -> exercises partial tail tile
    n_graph_nodes = 96      # residue-graph node count (small synthetic)
    hidden = 128            # lane-dense feature / hidden dim (multiple of 128)
    num_blocks = 2

    surface_x = jax.random.normal(k_surf, (n_surface_nodes, hidden), jnp.float32)
    graph_x = jax.random.normal(k_graph, (n_graph_nodes, hidden), jnp.float32)

    encoder = ProteinEncoder(num_blocks=num_blocks, hidden=hidden, key=k_params)
    surface_out, graph_out = encoder(surface=surface_x, graph=graph_x)
    jax.block_until_ready(surface_out)
    jax.block_until_ready(graph_out)

    # plain-JAX reference with identical bf16-weight / f32-accumulate / bf16-out
    def ref_chain(x, w_stack, b_stack):
        h = x
        for blk in range(w_stack.shape[0]):
            y = jnp.dot(h.astype(jnp.bfloat16), w_stack[blk],
                        preferred_element_type=jnp.float32)
            h = jnp.maximum(y + b_stack[blk], 0.0)
        return h.astype(_OUT_DTYPE)

    s_ref = ref_chain(surface_x, encoder.w_surf, encoder.b_surf)
    g_ref = ref_chain(graph_x, encoder.w_graph, encoder.b_graph)

    assert surface_out.shape == (n_surface_nodes, hidden)
    assert graph_out.shape == (n_graph_nodes, hidden)
    assert surface_out.dtype == _OUT_DTYPE and graph_out.dtype == _OUT_DTYPE
    assert jnp.allclose(surface_out.astype(jnp.float32), s_ref.astype(jnp.float32),
                        atol=5e-2, rtol=5e-2)
    assert jnp.allclose(graph_out.astype(jnp.float32), g_ref.astype(jnp.float32),
                        atol=5e-2, rtol=5e-2)

    print("KERNEL_OK")
</pallas_src>

<mosaic_0001>
module attributes {stable_mosaic.version = 11 : i64} {
  func.func @_block_chain_kernel(%arg0: i32, %arg1: memref<96x128xf32, #tpu.memory_space<vmem>>, %arg2: memref<2x128x128xbf16, #tpu.memory_space<vmem>>, %arg3: memref<2x1x128xf32, #tpu.memory_space<vmem>>, %arg4: memref<96x128xbf16, #tpu.memory_space<vmem>>) attributes {dimension_semantics = [#tpu.dimension_semantics<parallel>], iteration_bounds = array<i64: 1>, scalar_prefetch = 0 : i64, scratch_operands = 0 : i64, tpu.core_type = #tpu.core_type<tc>, window_params = [{transform_indices = @transform_0, window_bounds = array<i64: 96, 128>}, {pipeline_mode = #tpu.pipeline_mode<synchronous>, transform_indices = @transform_1, window_bounds = array<i64: 2, 128, 128>}, {pipeline_mode = #tpu.pipeline_mode<synchronous>, transform_indices = @transform_2, window_bounds = array<i64: 2, 1, 128>}, {transform_indices = @transform_3, window_bounds = array<i64: 96, 128>}]} {
    %c0 = arith.constant 0 : index
    %c0_0 = arith.constant 0 : index
    %0 = vector.load %arg1[%c0, %c0_0] : memref<96x128xf32, #tpu.memory_space<vmem>>, vector<96x128xf32>
    %1 = arith.truncf %0 : vector<96x128xf32> to vector<96x128xbf16>
    %c0_1 = arith.constant 0 : index
    %c0_2 = arith.constant 0 : index
    %c0_3 = arith.constant 0 : index
    %2 = vector.load %arg2[%c0_1, %c0_2, %c0_3] : memref<2x128x128xbf16, #tpu.memory_space<vmem>>, vector<1x128x128xbf16>
    %3 = vector.shape_cast %2 : vector<1x128x128xbf16> to vector<128x128xbf16>
    %cst = arith.constant dense<0.000000e+00> : vector<96x128xf32>
    %4 = tpu.matmul %1, %3, %cst {dimension_numbers = #tpu.dot_dimension_numbers<[1], [0], [0], [1], [0, 0, 1, 1], [], []>} : vector<96x128xbf16>, vector<128x128xbf16>, vector<96x128xf32> -> vector<96x128xf32>
    %c0_4 = arith.constant 0 : index
    %c0_5 = arith.constant 0 : index
    %c0_6 = arith.constant 0 : index
    %5 = vector.load %arg3[%c0_4, %c0_5, %c0_6] : memref<2x1x128xf32, #tpu.memory_space<vmem>>, vector<1x1x128xf32>
    %6 = vector.shape_cast %5 : vector<1x1x128xf32> to vector<1x128xf32>
    %7 = vector.broadcast %6 : vector<1x128xf32> to vector<96x128xf32>
    %8 = arith.addf %4, %7 : vector<96x128xf32>
    %cst_7 = arith.constant 0.000000e+00 : f32
    %9 = vector.broadcast %cst_7 : f32 to vector<96x128xf32>
    %10 = arith.maximumf %8, %9 : vector<96x128xf32>
    %11 = arith.truncf %10 : vector<96x128xf32> to vector<96x128xbf16>
    %c1 = arith.constant 1 : index
    %c0_8 = arith.constant 0 : index
    %c0_9 = arith.constant 0 : index
    %12 = vector.load %arg2[%c1, %c0_8, %c0_9] : memref<2x128x128xbf16, #tpu.memory_space<vmem>>, vector<1x128x128xbf16>
    %13 = vector.shape_cast %12 : vector<1x128x128xbf16> to vector<128x128xbf16>
    %cst_10 = arith.constant dense<0.000000e+00> : vector<96x128xf32>
    %14 = tpu.matmul %11, %13, %cst_10 {dimension_numbers = #tpu.dot_dimension_numbers<[1], [0], [0], [1], [0, 0, 1, 1], [], []>} : vector<96x128xbf16>, vector<128x128xbf16>, vector<96x128xf32> -> vector<96x128xf32>
    %c1_11 = arith.constant 1 : index
    %c0_12 = arith.constant 0 : index
    %c0_13 = arith.constant 0 : index
    %15 = vector.load %arg3[%c1_11, %c0_12, %c0_13] : memref<2x1x128xf32, #tpu.memory_space<vmem>>, vector<1x1x128xf32>
    %16 = vector.shape_cast %15 : vector<1x1x128xf32> to vector<1x128xf32>
    %17 = vector.broadcast %16 : vector<1x128xf32> to vector<96x128xf32>
    %18 = arith.addf %14, %17 : vector<96x128xf32>
    %cst_14 = arith.constant 0.000000e+00 : f32
    %19 = vector.broadcast %cst_14 : f32 to vector<96x128xf32>
    %20 = arith.maximumf %18, %19 : vector<96x128xf32>
    %21 = arith.truncf %20 : vector<96x128xf32> to vector<96x128xbf16>
    %c0_15 = arith.constant 0 : index
    %c0_16 = arith.constant 0 : index
    %22 = vector.load %arg4[%c0_15, %c0_16] : memref<96x128xbf16, #tpu.memory_space<vmem>>, vector<96x128xbf16>
    tpu.vector_store %arg4[%c0_15, %c0_16], %21 {strides = array<i32>} : memref<96x128xbf16, #tpu.memory_space<vmem>>, vector<96x128xbf16>,
    return
  }
  func.func @transform_0(%arg0: i32) -> (i32, i32) {
    %c0_i32 = arith.constant 0 : i32
    %c0_i32_0 = arith.constant 0 : i32
    return %arg0, %c0_i32 : i32, i32
  }
  func.func @transform_1(%arg0: i32) -> (i32, i32, i32) {
    %c0_i32 = arith.constant 0 : i32
    %c0_i32_0 = arith.constant 0 : i32
    %c0_i32_1 = arith.constant 0 : i32
    %c0_i32_2 = arith.constant 0 : i32
    return %c0_i32, %c0_i32_0, %c0_i32_1 : i32, i32, i32
  }
  func.func @transform_2(%arg0: i32) -> (i32, i32, i32) {
    %c0_i32 = arith.constant 0 : i32
    %c0_i32_0 = arith.constant 0 : i32
    %c0_i32_1 = arith.constant 0 : i32
    %c0_i32_2 = arith.constant 0 : i32
    return %c0_i32, %c0_i32_0, %c0_i32_1 : i32, i32, i32
  }
  func.func @transform_3(%arg0: i32) -> (i32, i32) {
    %c0_i32 = arith.constant 0 : i32
    %c0_i32_0 = arith.constant 0 : i32
    return %arg0, %c0_i32 : i32, i32
  }
}

module attributes {stable_mosaic.version = 11 : i64} {
  func.func @_block_chain_kernel(%arg0: i32, %arg1: memref<256x128xf32, #tpu.memory_space<vmem>>, %arg2: memref<2x128x128xbf16, #tpu.memory_space<vmem>>, %arg3: memref<2x1x128xf32, #tpu.memory_space<vmem>>, %arg4: memref<256x128xbf16, #tpu.memory_space<vmem>>) attributes {dimension_semantics = [#tpu.dimension_semantics<parallel>], iteration_bounds = array<i64: 2>, scalar_prefetch = 0 : i64, scratch_operands = 0 : i64, tpu.core_type = #tpu.core_type<tc>, window_params = [{transform_indices = @transform_0, window_bounds = array<i64: 256, 128>}, {pipeline_mode = #tpu.pipeline_mode<synchronous>, transform_indices = @transform_1, window_bounds = array<i64: 2, 128, 128>}, {pipeline_mode = #tpu.pipeline_mode<synchronous>, transform_indices = @transform_2, window_bounds = array<i64: 2, 1, 128>}, {transform_indices = @transform_3, window_bounds = array<i64: 256, 128>}]} {
    %c0 = arith.constant 0 : index
    %c0_0 = arith.constant 0 : index
    %0 = vector.load %arg1[%c0, %c0_0] : memref<256x128xf32, #tpu.memory_space<vmem>>, vector<256x128xf32>
    %1 = arith.truncf %0 : vector<256x128xf32> to vector<256x128xbf16>
    %c0_1 = arith.constant 0 : index
    %c0_2 = arith.constant 0 : index
    %c0_3 = arith.constant 0 : index
    %2 = vector.load %arg2[%c0_1, %c0_2, %c0_3] : memref<2x128x128xbf16, #tpu.memory_space<vmem>>, vector<1x128x128xbf16>
    %3 = vector.shape_cast %2 : vector<1x128x128xbf16> to vector<128x128xbf16>
    %cst = arith.constant dense<0.000000e+00> : vector<256x128xf32>
    %4 = tpu.matmul %1, %3, %cst {dimension_numbers = #tpu.dot_dimension_numbers<[1], [0], [0], [1], [0, 0, 1, 1], [], []>} : vector<256x128xbf16>, vector<128x128xbf16>, vector<256x128xf32> -> vector<256x128xf32>
    %c0_4 = arith.constant 0 : index
    %c0_5 = arith.constant 0 : index
    %c0_6 = arith.constant 0 : index
    %5 = vector.load %arg3[%c0_4, %c0_5, %c0_6] : memref<2x1x128xf32, #tpu.memory_space<vmem>>, vector<1x1x128xf32>
    %6 = vector.shape_cast %5 : vector<1x1x128xf32> to vector<1x128xf32>
    %7 = vector.broadcast %6 : vector<1x128xf32> to vector<256x128xf32>
    %8 = arith.addf %4, %7 : vector<256x128xf32>
    %cst_7 = arith.constant 0.000000e+00 : f32
    %9 = vector.broadcast %cst_7 : f32 to vector<256x128xf32>
    %10 = arith.maximumf %8, %9 : vector<256x128xf32>
    %11 = arith.truncf %10 : vector<256x128xf32> to vector<256x128xbf16>
    %c1 = arith.constant 1 : index
    %c0_8 = arith.constant 0 : index
    %c0_9 = arith.constant 0 : index
    %12 = vector.load %arg2[%c1, %c0_8, %c0_9] : memref<2x128x128xbf16, #tpu.memory_space<vmem>>, vector<1x128x128xbf16>
    %13 = vector.shape_cast %12 : vector<1x128x128xbf16> to vector<128x128xbf16>
    %cst_10 = arith.constant dense<0.000000e+00> : vector<256x128xf32>
    %14 = tpu.matmul %11, %13, %cst_10 {dimension_numbers = #tpu.dot_dimension_numbers<[1], [0], [0], [1], [0, 0, 1, 1], [], []>} : vector<256x128xbf16>, vector<128x128xbf16>, vector<256x128xf32> -> vector<256x128xf32>
    %c1_11 = arith.constant 1 : index
    %c0_12 = arith.constant 0 : index
    %c0_13 = arith.constant 0 : index
    %15 = vector.load %arg3[%c1_11, %c0_12, %c0_13] : memref<2x1x128xf32, #tpu.memory_space<vmem>>, vector<1x1x128xf32>
    %16 = vector.shape_cast %15 : vector<1x1x128xf32> to vector<1x128xf32>
    %17 = vector.broadcast %16 : vector<1x128xf32> to vector<256x128xf32>
    %18 = arith.addf %14, %17 : vector<256x128xf32>
    %cst_14 = arith.constant 0.000000e+00 : f32
    %19 = vector.broadcast %cst_14 : f32 to vector<256x128xf32>
    %20 = arith.maximumf %18, %19 : vector<256x128xf32>
    %21 = arith.truncf %20 : vector<256x128xf32> to vector<256x128xbf16>
    %c0_15 = arith.constant 0 : index
    %c0_16 = arith.constant 0 : index
    %22 = vector.load %arg4[%c0_15, %c0_16] : memref<256x128xbf16, #tpu.memory_space<vmem>>, vector<256x128xbf16>
    tpu.vector_store %arg4[%c0_15, %c0_16], %21 {strides = array<i32>} : memref<256x128xbf16, #tpu.memory_space<vmem>>, vector<256x128xbf16>,
    return
  }
  func.func @transform_0(%arg0: i32) -> (i32, i32) {
    %c0_i32 = arith.constant 0 : i32
    %c0_i32_0 = arith.constant 0 : i32
    return %arg0, %c0_i32 : i32, i32
  }
  func.func @transform_1(%arg0: i32) -> (i32, i32, i32) {
    %c0_i32 = arith.constant 0 : i32
    %c0_i32_0 = arith.constant 0 : i32
    %c0_i32_1 = arith.constant 0 : i32
    %c0_i32_2 = arith.constant 0 : i32
    return %c0_i32, %c0_i32_0, %c0_i32_1 : i32, i32, i32
  }
  func.func @transform_2(%arg0: i32) -> (i32, i32, i32) {
    %c0_i32 = arith.constant 0 : i32
    %c0_i32_0 = arith.constant 0 : i32
    %c0_i32_1 = arith.constant 0 : i32
    %c0_i32_2 = arith.constant 0 : i32
    return %c0_i32, %c0_i32_0, %c0_i32_1 : i32, i32, i32
  }
  func.func @transform_3(%arg0: i32) -> (i32, i32) {
    %c0_i32 = arith.constant 0 : i32
    %c0_i32_0 = arith.constant 0 : i32
    return %arg0, %c0_i32 : i32, i32
  }
}

</mosaic_0001>

<llo_original>
// kernel: _encoder_forward.3
$region0: #{_encoder_forward.3}
  #allocation0 [shape = 'u32[]', space=smem, size = 0x4, offset = 0x4, fixed_abs, tag = 'smem constant byte address 0x4 - core index']
  #allocation1 [shape = 'u32[72,128]{1,0:T(1,128)}', space=vmem, size = 0x9000, scoped, tag = 'internal scratch']
  %s0 = inlined_call_operand.hbm [shape: f32[96,128], index: 0, kind: input, shape index: {}]
  %s1 = inlined_call_operand.hbm [shape: bf16[2,128,128], index: 1, kind: input, shape index: {}]
  %s2 = inlined_call_operand.vmem [shape: f32[2,1,128], index: 2, kind: input, shape index: {}]
  %s3 = inlined_call_operand.hbm [shape: bf16[96,128], index: 3, kind: output, shape index: {}]
  %s4 = sld [smem:[#allocation0]]
  $region30: #{_encoder_forward.3} parent=0
    _
  %s6 = ssub.s32 1, %s4
  %s7 = scalar_select 0, %s6, %s4
  $region1: #{_encoder_forward.3} parent=0
    #allocation2 [shape = 'u8[49152]{0}', space=vmem, size = 0xc000, scoped, tag = 'input window, operand 0, single buffered']
    #allocation3 [shape = 's32[1]{0}', space=sflag, size = 0x4, scoped, tag = 'scoped memory for _encoder_forward.3']
    #allocation4 [shape = 's32[1]{0}', space=sflag, size = 0x4, scoped, tag = 'scoped memory for _encoder_forward.3']
    #allocation5 [shape = 'u8[65536]{0}', space=vmem, size = 0x10000, scoped, tag = 'input window, operand 1, single buffered']
    #allocation6 [shape = 's32[1]{0}', space=sflag, size = 0x4, scoped, tag = 'scoped memory for _encoder_forward.3']
    #allocation7 [shape = 'u8[24576]{0}', space=vmem, size = 0x6000, scoped, tag = 'output window, operand 0, single buffered']
    %8 = vsyncpa [#allocation3], 0
    %9 = vsyncpa [#allocation6], 0
    %10 = vsyncpa [#allocation4], 0
    // Predicated region
    $region2: #{_encoder_forward.3} parent=1 // pred_check
      _
    $region3: #{_encoder_forward.3} parent=1 // pred_check_branch
      %12 = sbr.rel (0) target = $region5
    $region4: #{_encoder_forward.3} parent=1 // pred_region
      %14 = vsyncadd [#allocation3], 0
      %s15 = sshll.u32 %s0, 4
      %s16 = int_to_ptr.hbm [resolvable:$true] %s15
      %s17 = sshll.u32 [#allocation2], 4
      %s18 = int_to_ptr.vmem [resolvable:$true] %s17
      %23 = dma.hbm_to_vmem [thread:$0]  %s16, 1536, %s18, [#allocation3], 128, 128, 8
    $region5: #{_encoder_forward.3} parent=1 // pred_fallthru
      _
    // Predicated region
    $region6: #{_encoder_forward.3} parent=1 // pred_check
      _
    $region7: #{_encoder_forward.3} parent=1 // pred_check_branch
      %25 = sbr.rel (0) target = $region9
    $region8: #{_encoder_forward.3} parent=1 // pred_region
      %27 = vsyncadd [#allocation6], 0
      %s28 = sshll.u32 %s1, 4
      %s29 = int_to_ptr.hbm [resolvable:$true] %s28
      %s30 = sshll.u32 [#allocation5], 4
      %s31 = int_to_ptr.vmem [resolvable:$true] %s30
      %36 = dma.hbm_to_vmem [thread:$0]  %s29, 2048, %s31, [#allocation6], 64, 64, 4
    $region9: #{_encoder_forward.3} parent=1 // pred_fallthru
      _
    // Predicated region
    $region10: #{_encoder_forward.3} parent=1 // pred_check
      _
    $region11: #{_encoder_forward.3} parent=1 // pred_check_branch
      %38 = sbr.rel (0) target = $region13
    $region12: #{_encoder_forward.3} parent=1 // pred_region
      _
    $region13: #{_encoder_forward.3} parent=1 // pred_fallthru
      _
    // Predicated region
    $region14: #{_encoder_forward.3} parent=1 // pred_check
      _
    $region15: #{_encoder_forward.3} parent=1 // pred_check_branch
      %40 = sbr.rel (0) target = $region17
    $region16: #{_encoder_forward.3} parent=1 // pred_region
      %42 = dma.done [#allocation3], 1536
    $region17: #{_encoder_forward.3} parent=1 // pred_fallthru
      _
    // Predicated region
    $region18: #{_encoder_forward.3} parent=1 // pred_check
      _
    $region19: #{_encoder_forward.3} parent=1 // pred_check_branch
      %44 = sbr.rel (0) target = $region21
    $region20: #{_encoder_forward.3} parent=1 // pred_region
      %46 = dma.done [#allocation6], 2048
    $region21: #{_encoder_forward.3} parent=1 // pred_fallthru
      _
    %v47 = vld [vmem:[#allocation2] sm:$0xff]
    %v48 = vld [vmem:[#allocation2 + $0x8] sm:$0xff]
    %v49 = vld [vmem:[#allocation2 + $0x10] sm:$0xff]
    %v50 = vld [vmem:[#allocation2 + $0x18] sm:$0xff]
    %v51 = vld [vmem:[#allocation2 + $0x20] sm:$0xff]
    %v52 = vld [vmem:[#allocation2 + $0x28] sm:$0xff]
    %v53 = vld [vmem:[#allocation2 + $0x30] sm:$0xff]
    %v54 = vld [vmem:[#allocation2 + $0x38] sm:$0xff]
    %v55 = vld [vmem:[#allocation2 + $0x40] sm:$0xff]
    %v56 = vld [vmem:[#allocation2 + $0x48] sm:$0xff]
    %v57 = vld [vmem:[#allocation2 + $0x50] sm:$0xff]
    %v58 = vld [vmem:[#allocation2 + $0x58] sm:$0xff]
    %v59 = vpack.c.bf16 %v48, %v47
    %v60 = vpack.c.bf16 %v50, %v49
    %v61 = vpack.c.bf16 %v52, %v51
    %v62 = vpack.c.bf16 %v54, %v53
    %v63 = vpack.c.bf16 %v56, %v55
    %v64 = vpack.c.bf16 %v58, %v57
    %v65 = vld [vmem:[#allocation5] sm:$0xf]
    %v66 = vld [vmem:[#allocation5 + $0x4] sm:$0xf]
    %v67 = vld [vmem:[#allocation5 + $0x8] sm:$0xf]
    %v68 = vld [vmem:[#allocation5 + $0xc] sm:$0xf]
    %v69 = vld [vmem:[#allocation5 + $0x10] sm:$0xf]
    %v70 = vld [vmem:[#allocation5 + $0x14] sm:$0xf]
    %v71 = vld [vmem:[#allocation5 + $0x18] sm:$0xf]
    %v72 = vld [vmem:[#allocation5 + $0x1c] sm:$0xf]
    %v73 = vld [vmem:[#allocation5 + $0x20] sm:$0xf]
    %v74 = vld [vmem:[#allocation5 + $0x24] sm:$0xf]
    %v75 = vld [vmem:[#allocation5 + $0x28] sm:$0xf]
    %v76 = vld [vmem:[#allocation5 + $0x2c] sm:$0xf]
    %v77 = vld [vmem:[#allocation5 + $0x30] sm:$0xf]
    %v78 = vld [vmem:[#allocation5 + $0x34] sm:$0xf]
    %v79 = vld [vmem:[#allocation5 + $0x38] sm:$0xf]
    %v80 = vld [vmem:[#allocation5 + $0x3c] sm:$0xf]
    %v81 = vld [vmem:[%s2] sm:$0x1]
    %v83 = vperm.slane %v81, 0
    %v101 = vunpack.c.l.b16 %v65
    %v102 = vunpack.c.l.b16 %v66
    %v103 = vunpack.c.l.b16 %v67
    %v104 = vunpack.c.l.b16 %v68
    %v105 = vunpack.c.l.b16 %v69
    %v106 = vunpack.c.l.b16 %v70
    %v107 = vunpack.c.l.b16 %v71
    %v108 = vunpack.c.l.b16 %v72
    %v109 = vunpack.c.l.b16 %v73
    %v110 = vunpack.c.l.b16 %v74
    %v111 = vunpack.c.l.b16 %v75
    %v112 = vunpack.c.l.b16 %v76
    %v113 = vunpack.c.l.b16 %v77
    %v114 = vunpack.c.l.b16 %v78
    %v115 = vunpack.c.l.b16 %v79
    %v116 = vunpack.c.l.b16 %v80
    %v117 = vpack.c.b16 %v102, %v101
    %v118 = vpack.c.b16 %v104, %v103
    %v119 = vpack.c.b16 %v106, %v105
    %v120 = vpack.c.b16 %v108, %v107
    %v121 = vpack.c.b16 %v110, %v109
    %v122 = vpack.c.b16 %v112, %v111
    %v123 = vpack.c.b16 %v114, %v113
    %v124 = vpack.c.b16 %v116, %v115
    %133 = vmatpush.bf16.msra.mxu0 %v124
    %134 = vmatpush.bf16.msra.mxu0 %v123
    %135 = vmatpush.bf16.msra.mxu0 %v122
    %136 = vmatpush.bf16.msra.mxu0 %v121
    %137 = vmatpush.bf16.msra.mxu0 %v120
    %138 = vmatpush.bf16.msra.mxu0 %v119
    %139 = vmatpush.bf16.msra.mxu0 %v118
    %140 = vmatpush.bf16.msra.mxu0 %v117
    %141 = vmatmul.bf16.gmra.mxu0 %v59
    %v142 = vpop.f32.mrf.mxu0
    %v143 = vadd.f32 %v83, %v142
    %v144 = vpop.f32.mrf.mxu0
    %v145 = vadd.f32 %v83, %v144
    %146 = vmatmul.bf16.gmra.mxu0 %v60
    %v147 = vpop.f32.mrf.mxu0
    %v148 = vadd.f32 %v83, %v147
    %v149 = vpop.f32.mrf.mxu0
    %v150 = vadd.f32 %v83, %v149
    %151 = vmatmul.bf16.gmra.mxu0 %v61
    %v152 = vpop.f32.mrf.mxu0
    %v153 = vadd.f32 %v83, %v152
    %v154 = vpop.f32.mrf.mxu0
    %v155 = vadd.f32 %v83, %v154
    %156 = vmatmul.bf16.gmra.mxu0 %v62
    %v157 = vpop.f32.mrf.mxu0
    %v158 = vadd.f32 %v83, %v157
    %v159 = vpop.f32.mrf.mxu0
    %v160 = vadd.f32 %v83, %v159
    %161 = vmatmul.bf16.gmra.mxu0 %v63
    %v162 = vpop.f32.mrf.mxu0
    %v163 = vadd.f32 %v83, %v162
    %v164 = vpop.f32.mrf.mxu0
    %v165 = vadd.f32 %v83, %v164
    %166 = vmatmul.bf16.gmra.mxu0 %v64
    %v167 = vpop.f32.mrf.mxu0
    %v168 = vadd.f32 %v83, %v167
    %v169 = vpop.f32.mrf.mxu0
    %v170 = vadd.f32 %v83, %v169
    %171 = vdwg.mxu0
    %v172 = vmax.f32 %v143, 0.0
    %v173 = vmax.f32 %v145, 0.0
    %v174 = vmax.f32 %v148, 0.0
    %v175 = vmax.f32 %v150, 0.0
    %v176 = vmax.f32 %v153, 0.0
    %v177 = vmax.f32 %v155, 0.0
    %v178 = vmax.f32 %v158, 0.0
    %v179 = vmax.f32 %v160, 0.0
    %v180 = vmax.f32 %v163, 0.0
    %v181 = vmax.f32 %v165, 0.0
    %v182 = vmax.f32 %v168, 0.0
    %v183 = vmax.f32 %v170, 0.0
    %v184 = vpack.c.bf16 %v173, %v172
    %v185 = vpack.c.bf16 %v175, %v174
    %v186 = vpack.c.bf16 %v177, %v176
    %v187 = vpack.c.bf16 %v179, %v178
    %v188 = vpack.c.bf16 %v181, %v180
    %v189 = vpack.c.bf16 %v183, %v182
    %s190 = scalar_lea.vmem [#allocation5], 64
    %v191 = vld [vmem:[%s190] sm:$0xf]
    %v192 = vld [vmem:[%s190 + $0x4] sm:$0xf]
    %v193 = vld [vmem:[%s190 + $0x8] sm:$0xf]
    %v194 = vld [vmem:[%s190 + $0xc] sm:$0xf]
    %v195 = vld [vmem:[%s190 + $0x10] sm:$0xf]
    %v196 = vld [vmem:[%s190 + $0x14] sm:$0xf]
    %v197 = vld [vmem:[%s190 + $0x18] sm:$0xf]
    %v198 = vld [vmem:[%s190 + $0x1c] sm:$0xf]
    %v199 = vld [vmem:[%s190 + $0x20] sm:$0xf]
    %v200 = vld [vmem:[%s190 + $0x24] sm:$0xf]
    %v201 = vld [vmem:[%s190 + $0x28] sm:$0xf]
    %v202 = vld [vmem:[%s190 + $0x2c] sm:$0xf]
    %v203 = vld [vmem:[%s190 + $0x30] sm:$0xf]
    %v204 = vld [vmem:[%s190 + $0x34] sm:$0xf]
    %v205 = vld [vmem:[%s190 + $0x38] sm:$0xf]
    %v206 = vld [vmem:[%s190 + $0x3c] sm:$0xf]
    %s207 = scalar_lea.vmem %s2, 1
    %v208 = vld [vmem:[%s207] sm:$0x1]
    %v210 = vperm.slane %v208, 0
    %v228 = vunpack.c.l.b16 %v191
    %v229 = vunpack.c.l.b16 %v192
    %v230 = vunpack.c.l.b16 %v193
    %v231 = vunpack.c.l.b16 %v194
    %v232 = vunpack.c.l.b16 %v195
    %v233 = vunpack.c.l.b16 %v196
    %v234 = vunpack.c.l.b16 %v197
    %v235 = vunpack.c.l.b16 %v198
    %v236 = vunpack.c.l.b16 %v199
    %v237 = vunpack.c.l.b16 %v200
    %v238 = vunpack.c.l.b16 %v201
    %v239 = vunpack.c.l.b16 %v202
    %v240 = vunpack.c.l.b16 %v203
    %v241 = vunpack.c.l.b16 %v204
    %v242 = vunpack.c.l.b16 %v205
    %v243 = vunpack.c.l.b16 %v206
    %v244 = vpack.c.b16 %v229, %v228
    %v245 = vpack.c.b16 %v231, %v230
    %v246 = vpack.c.b16 %v233, %v232
    %v247 = vpack.c.b16 %v235, %v234
    %v248 = vpack.c.b16 %v237, %v236
    %v249 = vpack.c.b16 %v239, %v238
    %v250 = vpack.c.b16 %v241, %v240
    %v251 = vpack.c.b16 %v243, %v242
    %260 = vmatpush.bf16.msra.mxu0 %v251
    %261 = vmatpush.bf16.msra.mxu0 %v250
    %262 = vmatpush.bf16.msra.mxu0 %v249
    %263 = vmatpush.bf16.msra.mxu0 %v248
    %264 = vmatpush.bf16.msra.mxu0 %v247
    %265 = vmatpush.bf16.msra.mxu0 %v246
    %266 = vmatpush.bf16.msra.mxu0 %v245
    %267 = vmatpush.bf16.msra.mxu0 %v244
    %268 = vmatmul.bf16.gmra.mxu0 %v184
    %v269 = vpop.f32.mrf.mxu0
    %v270 = vadd.f32 %v210, %v269
    %v271 = vpop.f32.mrf.mxu0
    %v272 = vadd.f32 %v210, %v271
    %273 = vmatmul.bf16.gmra.mxu0 %v185
    %v274 = vpop.f32.mrf.mxu0
    %v275 = vadd.f32 %v210, %v274
    %v276 = vpop.f32.mrf.mxu0
    %v277 = vadd.f32 %v210, %v276
    %278 = vmatmul.bf16.gmra.mxu0 %v186
    %v279 = vpop.f32.mrf.mxu0
    %v280 = vadd.f32 %v210, %v279
    %v281 = vpop.f32.mrf.mxu0
    %v282 = vadd.f32 %v210, %v281
    %283 = vmatmul.bf16.gmra.mxu0 %v187
    %v284 = vpop.f32.mrf.mxu0
    %v285 = vadd.f32 %v210, %v284
    %v286 = vpop.f32.mrf.mxu0
    %v287 = vadd.f32 %v210, %v286
    %288 = vmatmul.bf16.gmra.mxu0 %v188
    %v289 = vpop.f32.mrf.mxu0
    %v290 = vadd.f32 %v210, %v289
    %v291 = vpop.f32.mrf.mxu0
    %v292 = vadd.f32 %v210, %v291
    %293 = vmatmul.bf16.gmra.mxu0 %v189
    %v294 = vpop.f32.mrf.mxu0
    %v295 = vadd.f32 %v210, %v294
    %v296 = vpop.f32.mrf.mxu0
    %v297 = vadd.f32 %v210, %v296
    %298 = vdwg.mxu0
    %v299 = vmax.f32 %v270, 0.0
    %v300 = vmax.f32 %v272, 0.0
    %v301 = vmax.f32 %v275, 0.0
    %v302 = vmax.f32 %v277, 0.0
    %v303 = vmax.f32 %v280, 0.0
    %v304 = vmax.f32 %v282, 0.0
    %v305 = vmax.f32 %v285, 0.0
    %v306 = vmax.f32 %v287, 0.0
    %v307 = vmax.f32 %v290, 0.0
    %v308 = vmax.f32 %v292, 0.0
    %v309 = vmax.f32 %v295, 0.0
    %v310 = vmax.f32 %v297, 0.0
    %v311 = vpack.c.bf16 %v299, %v299
    %v312 = vpack.c.bf16 %v300, %v300
    %v313 = vpack.c.bf16 %v301, %v301
    %v314 = vpack.c.bf16 %v302, %v302
    %v315 = vpack.c.bf16 %v303, %v303
    %v316 = vpack.c.bf16 %v304, %v304
    %v317 = vpack.c.bf16 %v305, %v305
    %v318 = vpack.c.bf16 %v306, %v306
    %v319 = vpack.c.bf16 %v307, %v307
    %v320 = vpack.c.bf16 %v308, %v308
    %v321 = vpack.c.bf16 %v309, %v309
    %v322 = vpack.c.bf16 %v310, %v310
    %323 = vst [vmem:[#allocation7] sm:$0xf] %v311
    %324 = vst [vmem:[#allocation7 + $0x4] sm:$0xf] %v312
    %325 = vst [vmem:[#allocation7 + $0x8] sm:$0xf] %v313
    %326 = vst [vmem:[#allocation7 + $0xc] sm:$0xf] %v314
    %327 = vst [vmem:[#allocation7 + $0x10] sm:$0xf] %v315
    %328 = vst [vmem:[#allocation7 + $0x14] sm:$0xf] %v316
    %329 = vst [vmem:[#allocation7 + $0x18] sm:$0xf] %v317
    %330 = vst [vmem:[#allocation7 + $0x1c] sm:$0xf] %v318
    %331 = vst [vmem:[#allocation7 + $0x20] sm:$0xf] %v319
    %332 = vst [vmem:[#allocation7 + $0x24] sm:$0xf] %v320
    %333 = vst [vmem:[#allocation7 + $0x28] sm:$0xf] %v321
    %334 = vst [vmem:[#allocation7 + $0x2c] sm:$0xf] %v322
    // Predicated region
    $region22: #{_encoder_forward.3} parent=1 // pred_check
      _
    $region23: #{_encoder_forward.3} parent=1 // pred_check_branch
      %336 = sbr.rel (0) target = $region25
    $region24: #{_encoder_forward.3} parent=1 // pred_region
      %338 = vsyncadd [#allocation4], 0
      %s339 = sshll.u32 [#allocation7], 4
      %s340 = int_to_ptr.vmem [resolvable:$true] %s339
      %s341 = sshll.u32 %s3, 4
      %s342 = int_to_ptr.hbm [resolvable:$true] %s341
      %347 = dma.vmem_to_hbm [thread:$0]  %s340, 768, %s342, [#allocation4], 64, 64, 4
    $region25: #{_encoder_forward.3} parent=1 // pred_fallthru
      _
    // Predicated region
    $region26: #{_encoder_forward.3} parent=1 // pred_check
      _
    $region27: #{_encoder_forward.3} parent=1 // pred_check_branch
      %349 = sbr.rel (0) target = $region29
    $region28: #{_encoder_forward.3} parent=1 // pred_region
      %351 = dma.done [#allocation4], 768
    $region29: #{_encoder_forward.3} parent=1 // pred_fallthru
      _
    %352 = vsyncpa [#allocation3], 1
    %353 = vsyncpa [#allocation6], 1
    %354 = vsyncpa [#allocation4], 1

// kernel: _encoder_forward.2
$region0: #{_encoder_forward.2}
  #allocation0 [shape = 'u32[]', space=smem, size = 0x4, offset = 0x4, fixed_abs, tag = 'smem constant byte address 0x4 - core index']
  #allocation1 [shape = 'u32[72,128]{1,0:T(1,128)}', space=vmem, size = 0x9000, scoped, tag = 'internal scratch']
  %s0 = inlined_call_operand.hbm [shape: f32[500,128], index: 0, kind: input, shape index: {}]
  %s1 = inlined_call_operand.vmem [shape: bf16[2,128,128], index: 1, kind: input, shape index: {}]
  %s2 = inlined_call_operand.vmem [shape: f32[2,1,128], index: 2, kind: input, shape index: {}]
  %s3 = inlined_call_operand.hbm [shape: bf16[500,128], index: 3, kind: output, shape index: {}]
  %s4 = sld [smem:[#allocation0]]
  $region49: #{_encoder_forward.2} parent=0
    _
  %s6 = ssub.s32 1, %s4
  %s7 = scalar_select 0, %s6, %s4
  $region1: #{_encoder_forward.2} parent=0
    #allocation2 [shape = 'u8[262144]{0}', space=vmem, size = 0x40000, scoped, tag = 'input window, operand 0']
    #allocation3 [shape = 's32[2]{0}', space=sflag, size = 0x8, scoped, tag = 'scoped memory for _encoder_forward.2']
    #allocation4 [shape = 's32[2]{0}', space=sflag, size = 0x8, scoped, tag = 'scoped memory for _encoder_forward.2']
    #allocation5 [shape = 'u8[131072]{0}', space=vmem, size = 0x20000, scoped, tag = 'output window, operand 0']
    %8 = vsyncpa [#allocation3], 0
    %s9 = scalar_lea.sflag [#allocation3], 1
    %10 = vsyncpa %s9, 0
    %11 = vsyncpa [#allocation4], 0
    %s12 = scalar_lea.sflag [#allocation4], 1
    %13 = vsyncpa %s12, 0
    loop: start=0, step=1, limit=4
    $region2: #{_encoder_forward.2} parent=1 // loop_pre_header
      _
    $region3: #{_encoder_forward.2} parent=1 // loop_header
      %s15 = sphi 0, %s19
      %p16 = scmp.ge.s32.totalorder %s15, 4
      %s25 = sphi 0, %s27
      %s28 = sphi 0, %s25
      %s29 = sphi 0, %s28
      %s45 = sphi 0, %s29
      %s49 = sphi 0, %s49
      %s51 = sphi 0, %s49
      %s52 = sphi 0, %s51
      %s66 = sphi 0, %s52
      %s70 = sphi 0, %s70
      %s72 = sphi 0, %s70
      %s73 = sphi 0, %s72
      %s87 = sphi 0, %s73
      %s93 = sphi 0, %s95
      %s96 = sphi 0, %s93
      %s97 = sphi 0, %s96
      %s113 = sphi 0, %s97
    $region4: #{_encoder_forward.2} parent=1 // loop_header_branch
      %18 = sbr.rel (%p16) target = $region8
    $region5: #{_encoder_forward.2} parent=1 // loop_body
      %s20 = ssub.s32 %s15, 1
      %s21 = ssub.s32 %s15, 2
      %s22 = sadd.s32 %s15, 1
      %s23 = ssub.s32 %s15, %s22
      %p24 = scmp.eq.s32.totalorder %s23, 0
      %s26 = sadd.s32 %s25, 1
      %s27 = scalar_select %p24, %s25, %s26
      %p30 = pneg %p24
      %p31 = scmp.eq.s32.totalorder %s15, 1
      %p32 = por %p30, %p31
      %p33 = scmp.ne.s32.totalorder %s25, %s28
      %p34 = scmp.eq.s32.totalorder %s15, 0
      %p35 = por %p33, %p34
      %p36 = scmp.ne.s32.totalorder %s25, %s28
      %p37 = scmp.eq.s32.totalorder %s20, 1
      %p38 = por %p36, %p37
      %p39 = scmp.ne.s32.totalorder %s28, %s29
      %p40 = scmp.eq.s32.totalorder %s20, 0
      %p41 = por %p39, %p40
      %p42 = scmp.ne.s32.totalorder %s28, %s29
      %p43 = scmp.eq.s32.totalorder %s21, 1
      %p44 = por %p42, %p43
      %p46 = scmp.ne.s32.totalorder %s29, %s45
      %p47 = scmp.eq.s32.totalorder %s21, 0
      %p48 = por %p46, %p47
      %s50 = sadd.s32 %s49, 1
      %p53 = scmp.eq.s32.totalorder %s15, 1
      %p54 = scmp.ne.s32.totalorder %s49, %s51
      %p55 = scmp.eq.s32.totalorder %s15, 0
      %p56 = por %p54, %p55
      %p57 = scmp.ne.s32.totalorder %s49, %s51
      %p58 = scmp.eq.s32.totalorder %s20, 1
      %p59 = por %p57, %p58
      %p60 = scmp.ne.s32.totalorder %s51, %s52
      %p61 = scmp.eq.s32.totalorder %s20, 0
      %p62 = por %p60, %p61
      %p63 = scmp.ne.s32.totalorder %s51, %s52
      %p64 = scmp.eq.s32.totalorder %s21, 1
      %p65 = por %p63, %p64
      %p67 = scmp.ne.s32.totalorder %s52, %s66
      %p68 = scmp.eq.s32.totalorder %s21, 0
      %p69 = por %p67, %p68
      %s71 = sadd.s32 %s70, 1
      %p74 = scmp.eq.s32.totalorder %s15, 1
      %p75 = scmp.ne.s32.totalorder %s70, %s72
      %p76 = scmp.eq.s32.totalorder %s15, 0
      %p77 = por %p75, %p76
      %p78 = scmp.ne.s32.totalorder %s70, %s72
      %p79 = scmp.eq.s32.totalorder %s20, 1
      %p80 = por %p78, %p79
      %p81 = scmp.ne.s32.totalorder %s72, %s73
      %p82 = scmp.eq.s32.totalorder %s20, 0
      %p83 = por %p81, %p82
      %p84 = scmp.ne.s32.totalorder %s72, %s73
      %p85 = scmp.eq.s32.totalorder %s21, 1
      %p86 = por %p84, %p85
      %p88 = scmp.ne.s32.totalorder %s73, %s87
      %p89 = scmp.eq.s32.totalorder %s21, 0
      %p90 = por %p88, %p89
      %s91 = ssub.s32 %s15, %s22
      %p92 = scmp.eq.s32.totalorder %s91, 0
      %s94 = sadd.s32 %s93, 1
      %s95 = scalar_select %p92, %s93, %s94
      %p98 = pneg %p92
      %p99 = scmp.eq.s32.totalorder %s15, 1
      %p100 = por %p98, %p99
      %p101 = scmp.ne.s32.totalorder %s93, %s96
      %p102 = scmp.eq.s32.totalorder %s15, 0
      %p103 = por %p101, %p102
      %p104 = scmp.ne.s32.totalorder %s93, %s96
      %p105 = scmp.eq.s32.totalorder %s20, 1
      %p106 = por %p104, %p105
      %p107 = scmp.ne.s32.totalorder %s96, %s97
      %p108 = scmp.eq.s32.totalorder %s20, 0
      %p109 = por %p107, %p108
      %p110 = scmp.ne.s32.totalorder %s96, %s97
      %p111 = scmp.eq.s32.totalorder %s21, 1
      %p112 = por %p110, %p111
      %p114 = scmp.ne.s32.totalorder %s97, %s113
      %p115 = scmp.eq.s32.totalorder %s21, 0
      %p116 = por %p114, %p115
      %p117 = scmp.le.s32.totalorder 1, %s15
      %p118 = scmp.lt.s32.totalorder %s15, 3
      %p119 = pnand %p117, %p118
      %p120 = pneg %p119
      // Predicated region
      $region9: #{_encoder_forward.2} parent=5 // pred_check
        _
      $region10: #{_encoder_forward.2} parent=5 // pred_check_branch
        %122 = sbr.rel (%p119) target = $region12
      $region11: #{_encoder_forward.2} parent=5 // pred_region
        %s123 = ssub.s32 %s15, 1
        // Predicated region
        $region13: #{_encoder_forward.2} parent=11 // pred_check
          %p124 = pneg %p62
        $region14: #{_encoder_forward.2} parent=11 // pred_check_branch
          %126 = sbr.rel (%p124) target = $region16
        $region15: #{_encoder_forward.2} parent=11 // pred_region
          _
        $region16: #{_encoder_forward.2} parent=11 // pred_fallthru
          _
        // Predicated region
        $region17: #{_encoder_forward.2} parent=11 // pred_check
          %p127 = pneg %p83
        $region18: #{_encoder_forward.2} parent=11 // pred_check_branch
          %129 = sbr.rel (%p127) target = $region20
        $region19: #{_encoder_forward.2} parent=11 // pred_region
          _
        $region20: #{_encoder_forward.2} parent=11 // pred_fallthru
          _
      $region12: #{_encoder_forward.2} parent=5 // pred_fallthru
        _
      %p130 = scmp.lt.s32.totalorder %s15, 2
      // Predicated region
      $region21: #{_encoder_forward.2} parent=5 // pred_check
        %p131 = pneg %p130
      $region22: #{_encoder_forward.2} parent=5 // pred_check_branch
        %133 = sbr.rel (%p131) target = $region24
      $region23: #{_encoder_forward.2} parent=5 // pred_region
        // Predicated region
        $region25: #{_encoder_forward.2} parent=23 // pred_check
          %p134 = pneg %p35
        $region26: #{_encoder_forward.2} parent=23 // pred_check_branch
          %136 = sbr.rel (%p134) target = $region28
        $region27: #{_encoder_forward.2} parent=23 // pred_region
          %s137 = sand.u32 %s25, 1
          %s138 = scalar_lea.sflag [#allocation3], %s137
          %s139 = sand.u32 %s25, 1
          %s140 = smul.addr %s139, 256
          %s141 = scalar_lea.vmem [#allocation2], %s140
          %s142 = smul.u32 32, %s15
          %s143 = ssub.s32 63, %s142
          %p144 = scmp.lt.s32.totalorder %s143, 32
          %s145 = scalar_select %p144, %s143, 32
          %s146 = smul.u32 8, %s145
          %s147 = ssub.s32 256, %s146
          %s148 = sshll.u32 %s147, 4
          %149 = vsyncadd %s138, %s148
          %p150 = scmp.ne.s32.totalorder 0, %s146
          %s151 = smul.addr %s142, 8
          %s152 = scalar_lea.hbm %s0, %s151
          %s153 = smul.u32 8, %s145
          %s154 = sshll.u32 %s152, 4
          %s155 = int_to_ptr.hbm [resolvable:$true] %s154
          %s156 = sshll.u32 %s141, 4
          %s157 = int_to_ptr.vmem [resolvable:$true] %s156
          %s158 = sshll.u32 %s153, 4
          %162 = dma.hbm_to_vmem [thread:$0]  (%p150), %s155, %s158, %s157, %s138, 128, 128, 8
        $region28: #{_encoder_forward.2} parent=23 // pred_fallthru
          _
      $region24: #{_encoder_forward.2} parent=5 // pred_fallthru
        _
      %p163 = scmp.le.s32.totalorder 1, %s15
      %p164 = scmp.lt.s32.totalorder %s15, 3
      %p165 = pnand %p163, %p164
      %p166 = pneg %p165
      // Predicated region
      $region29: #{_encoder_forward.2} parent=5 // pred_check
        _
      $region30: #{_encoder_forward.2} parent=5 // pred_check_branch
        %168 = sbr.rel (%p165) target = $region32
      $region31: #{_encoder_forward.2} parent=5 // pred_region
        %s169 = ssub.s32 %s15, 1
        %s170 = sand.u32 %s28, 1
        %s171 = scalar_lea.sflag [#allocation3], %s170
        %s172 = sand.u32 %s28, 1
        %s173 = smul.addr %s172, 256
        %s174 = scalar_lea.vmem [#allocation2], %s173
        // Predicated region
        $region33: #{_encoder_forward.2} parent=31 // pred_check
          %p175 = pneg %p41
        $region34: #{_encoder_forward.2} parent=31 // pred_check_branch
          %177 = sbr.rel (%p175) target = $region36
        $region35: #{_encoder_forward.2} parent=31 // pred_region
          %179 = dma.done %s171, 4096
        $region36: #{_encoder_forward.2} parent=31 // pred_fallthru
          _
        %s180 = sand.u32 %s28, 1
        %s181 = scalar_lea.sflag [#allocation3], %s180
        %s182 = sand.u32 %s28, 1
        %s183 = smul.addr %s182, 256
        %s184 = scalar_lea.vmem [#allocation2], %s183
        %p185 = pneg %p41
        %p186 = pneg %p38
        %p187 = pneg %p62
        %p188 = pneg %p59
        %p189 = pneg %p83
        %p190 = pneg %p80
        %p191 = pneg %p109
        %p192 = pneg %p106
        %s193 = sand.u32 %s96, 1
        %s194 = scalar_lea.sflag [#allocation4], %s193
        %s195 = sand.u32 %s96, 1
        %s196 = smul.addr %s195, 128
        %s197 = scalar_lea.vmem [#allocation5], %s196
        %s198 = smul.u32 32, %s20
        %s199 = ssub.s32 63, %s198
        %p200 = scmp.lt.s32.totalorder %s199, 32
        %s201 = scalar_select %p200, %s199, 32
        %s202 = smul.u32 8, %s201
        %s203 = smul.u32 32, %s20
        %s204 = ssub.s32 63, %s203
        %p205 = scmp.lt.s32.totalorder %s204, 32
        %s206 = scalar_select %p205, %s204, 32
        %s207 = smul.u32 4, %s206
        %v208 = vld [vmem:[%s174] sm:$0xff]
        %v209 = vld [vmem:[%s174 + $0x8] sm:$0xff]
        %v210 = vld [vmem:[%s174 + $0x10] sm:$0xff]
        %v211 = vld [vmem:[%s174 + $0x18] sm:$0xff]
        %v212 = vld [vmem:[%s174 + $0x20] sm:$0xff]
        %v213 = vld [vmem:[%s174 + $0x28] sm:$0xff]
        %v214 = vld [vmem:[%s174 + $0x30] sm:$0xff]
        %v215 = vld [vmem:[%s174 + $0x38] sm:$0xff]
        %v216 = vld [vmem:[%s174 + $0x40] sm:$0xff]
        %v217 = vld [vmem:[%s174 + $0x48] sm:$0xff]
        %v218 = vld [vmem:[%s174 + $0x50] sm:$0xff]
        %v219 = vld [vmem:[%s174 + $0x58] sm:$0xff]
        %v220 = vld [vmem:[%s174 + $0x60] sm:$0xff]
        %v221 = vld [vmem:[%s174 + $0x68] sm:$0xff]
        %v222 = vld [vmem:[%s174 + $0x70] sm:$0xff]
        %v223 = vld [vmem:[%s174 + $0x78] sm:$0xff]
        %v224 = vld [vmem:[%s174 + $0x80] sm:$0xff]
        %v225 = vld [vmem:[%s174 + $0x88] sm:$0xff]
        %v226 = vld [vmem:[%s174 + $0x90] sm:$0xff]
        %v227 = vld [vmem:[%s174 + $0x98] sm:$0xff]
        %v228 = vld [vmem:[%s174 + $0xa0] sm:$0xff]
        %v229 = vld [vmem:[%s174 + $0xa8] sm:$0xff]
        %v230 = vld [vmem:[%s174 + $0xb0] sm:$0xff]
        %v231 = vld [vmem:[%s174 + $0xb8] sm:$0xff]
        %v232 = vld [vmem:[%s174 + $0xc0] sm:$0xff]
        %v233 = vld [vmem:[%s174 + $0xc8] sm:$0xff]
        %v234 = vld [vmem:[%s174 + $0xd0] sm:$0xff]
        %v235 = vld [vmem:[%s174 + $0xd8] sm:$0xff]
        %v236 = vld [vmem:[%s174 + $0xe0] sm:$0xff]
        %v237 = vld [vmem:[%s174 + $0xe8] sm:$0xff]
        %v238 = vld [vmem:[%s174 + $0xf0] sm:$0xff]
        %v239 = vld [vmem:[%s174 + $0xf8] sm:$0xff]
        %v240 = vpack.c.bf16 %v209, %v208
        %v241 = vpack.c.bf16 %v211, %v210
        %v242 = vpack.c.bf16 %v213, %v212
        %v243 = vpack.c.bf16 %v215, %v214
        %v244 = vpack.c.bf16 %v217, %v216
        %v245 = vpack.c.bf16 %v219, %v218
        %v246 = vpack.c.bf16 %v221, %v220
        %v247 = vpack.c.bf16 %v223, %v222
        %v248 = vpack.c.bf16 %v225, %v224
        %v249 = vpack.c.bf16 %v227, %v226
        %v250 = vpack.c.bf16 %v229, %v228
        %v251 = vpack.c.bf16 %v231, %v230
        %v252 = vpack.c.bf16 %v233, %v232
        %v253 = vpack.c.bf16 %v235, %v234
        %v254 = vpack.c.bf16 %v237, %v236
        %v255 = vpack.c.bf16 %v239, %v238
        %v256 = vld [vmem:[%s1] sm:$0xf]
        %v257 = vld [vmem:[%s1 + $0x4] sm:$0xf]
        %v258 = vld [vmem:[%s1 + $0x8] sm:$0xf]
        %v259 = vld [vmem:[%s1 + $0xc] sm:$0xf]
        %v260 = vld [vmem:[%s1 + $0x10] sm:$0xf]
        %v261 = vld [vmem:[%s1 + $0x14] sm:$0xf]
        %v262 = vld [vmem:[%s1 + $0x18] sm:$0xf]
        %v263 = vld [vmem:[%s1 + $0x1c] sm:$0xf]
        %v264 = vld [vmem:[%s1 + $0x20] sm:$0xf]
        %v265 = vld [vmem:[%s1 + $0x24] sm:$0xf]
        %v266 = vld [vmem:[%s1 + $0x28] sm:$0xf]
        %v267 = vld [vmem:[%s1 + $0x2c] sm:$0xf]
        %v268 = vld [vmem:[%s1 + $0x30] sm:$0xf]
        %v269 = vld [vmem:[%s1 + $0x34] sm:$0xf]
        %v270 = vld [vmem:[%s1 + $0x38] sm:$0xf]
        %v271 = vld [vmem:[%s1 + $0x3c] sm:$0xf]
        %v272 = vld [vmem:[%s2] sm:$0x1]
        %v274 = vperm.slane %v272, 0
        %v292 = vunpack.c.l.b16 %v256
        %v293 = vunpack.c.l.b16 %v257
        %v294 = vunpack.c.l.b16 %v258
        %v295 = vunpack.c.l.b16 %v259
        %v296 = vunpack.c.l.b16 %v260
        %v297 = vunpack.c.l.b16 %v261
        %v298 = vunpack.c.l.b16 %v262
        %v299 = vunpack.c.l.b16 %v263
        %v300 = vunpack.c.l.b16 %v264
        %v301 = vunpack.c.l.b16 %v265
        %v302 = vunpack.c.l.b16 %v266
        %v303 = vunpack.c.l.b16 %v267
        %v304 = vunpack.c.l.b16 %v268
        %v305 = vunpack.c.l.b16 %v269
        %v306 = vunpack.c.l.b16 %v270
        %v307 = vunpack.c.l.b16 %v271
        %v308 = vpack.c.b16 %v293, %v292
        %v309 = vpack.c.b16 %v295, %v294
        %v310 = vpack.c.b16 %v297, %v296
        %v311 = vpack.c.b16 %v299, %v298
        %v312 = vpack.c.b16 %v301, %v300
        %v313 = vpack.c.b16 %v303, %v302
        %v314 = vpack.c.b16 %v305, %v304
        %v315 = vpack.c.b16 %v307, %v306
        %324 = vmatpush.bf16.msra.mxu0 %v315
        %325 = vmatpush.bf16.msra.mxu0 %v314
        %326 = vmatpush.bf16.msra.mxu0 %v313
        %327 = vmatpush.bf16.msra.mxu0 %v312
        %328 = vmatpush.bf16.msra.mxu0 %v311
        %329 = vmatpush.bf16.msra.mxu0 %v310
        %330 = vmatpush.bf16.msra.mxu0 %v309
        %331 = vmatpush.bf16.msra.mxu0 %v308
        %332 = vmatmul.bf16.gmra.mxu0 %v240
        %v333 = vpop.f32.mrf.mxu0
        %v334 = vadd.f32 %v274, %v333
        %v335 = vpop.f32.mrf.mxu0
        %v336 = vadd.f32 %v274, %v335
        %337 = vmatmul.bf16.gmra.mxu0 %v241
        %v338 = vpop.f32.mrf.mxu0
        %v339 = vadd.f32 %v274, %v338
        %v340 = vpop.f32.mrf.mxu0
        %v341 = vadd.f32 %v274, %v340
        %342 = vmatmul.bf16.gmra.mxu0 %v242
        %v343 = vpop.f32.mrf.mxu0
        %v344 = vadd.f32 %v274, %v343
        %v345 = vpop.f32.mrf.mxu0
        %v346 = vadd.f32 %v274, %v345
        %347 = vmatmul.bf16.gmra.mxu0 %v243
        %v348 = vpop.f32.mrf.mxu0
        %v349 = vadd.f32 %v274, %v348
        %v350 = vpop.f32.mrf.mxu0
        %v351 = vadd.f32 %v274, %v350
        %352 = vmatmul.bf16.gmra.mxu0 %v244
        %v353 = vpop.f32.mrf.mxu0
        %v354 = vadd.f32 %v274, %v353
        %v355 = vpop.f32.mrf.mxu0
        %v356 = vadd.f32 %v274, %v355
        %357 = vmatmul.bf16.gmra.mxu0 %v245
        %v358 = vpop.f32.mrf.mxu0
        %v359 = vadd.f32 %v274, %v358
        %v360 = vpop.f32.mrf.mxu0
        %v361 = vadd.f32 %v274, %v360
        %362 = vmatmul.bf16.gmra.mxu0 %v246
        %v363 = vpop.f32.mrf.mxu0
        %v364 = vadd.f32 %v274, %v363
        %v365 = vpop.f32.mrf.mxu0
        %v366 = vadd.f32 %v274, %v365
        %367 = vmatmul.bf16.gmra.mxu0 %v247
        %v368 = vpop.f32.mrf.mxu0
        %v369 = vadd.f32 %v274, %v368
        %v370 = vpop.f32.mrf.mxu0
        %v371 = vadd.f32 %v274, %v370
        %372 = vmatmul.bf16.gmra.mxu0 %v248
        %v373 = vpop.f32.mrf.mxu0
        %v374 = vadd.f32 %v274, %v373
        %v375 = vpop.f32.mrf.mxu0
        %v376 = vadd.f32 %v274, %v375
        %377 = vmatmul.bf16.gmra.mxu0 %v249
        %v378 = vpop.f32.mrf.mxu0
        %v379 = vadd.f32 %v274, %v378
        %v380 = vpop.f32.mrf.mxu0
        %v381 = vadd.f32 %v274, %v380
        %382 = vmatmul.bf16.gmra.mxu0 %v250
        %v383 = vpop.f32.mrf.mxu0
        %v384 = vadd.f32 %v274, %v383
        %v385 = vpop.f32.mrf.mxu0
        %v386 = vadd.f32 %v274, %v385
        %387 = vmatmul.bf16.gmra.mxu0 %v251
        %v388 = vpop.f32.mrf.mxu0
        %v389 = vadd.f32 %v274, %v388
        %v390 = vpop.f32.mrf.mxu0
        %v391 = vadd.f32 %v274, %v390
        %392 = vmatmul.bf16.gmra.mxu0 %v252
        %v393 = vpop.f32.mrf.mxu0
        %v394 = vadd.f32 %v274, %v393
        %v395 = vpop.f32.mrf.mxu0
        %v396 = vadd.f32 %v274, %v395
        %397 = vmatmul.bf16.gmra.mxu0 %v253
        %v398 = vpop.f32.mrf.mxu0
        %v399 = vadd.f32 %v274, %v398
        %v400 = vpop.f32.mrf.mxu0
        %v401 = vadd.f32 %v274, %v400
        %402 = vmatmul.bf16.gmra.mxu0 %v254
        %v403 = vpop.f32.mrf.mxu0
        %v404 = vadd.f32 %v274, %v403
        %v405 = vpop.f32.mrf.mxu0
        %v406 = vadd.f32 %v274, %v405
        %407 = vmatmul.bf16.gmra.mxu0 %v255
        %v408 = vpop.f32.mrf.mxu0
        %v409 = vadd.f32 %v274, %v408
        %v410 = vpop.f32.mrf.mxu0
        %v411 = vadd.f32 %v274, %v410
        %412 = vdwg.mxu0
        %v413 = vmax.f32 %v334, 0.0
        %v414 = vmax.f32 %v336, 0.0
        %v415 = vmax.f32 %v339, 0.0
        %v416 = vmax.f32 %v341, 0.0
        %v417 = vmax.f32 %v344, 0.0
        %v418 = vmax.f32 %v346, 0.0
        %v419 = vmax.f32 %v349, 0.0
        %v420 = vmax.f32 %v351, 0.0
        %v421 = vmax.f32 %v354, 0.0
        %v422 = vmax.f32 %v356, 0.0
        %v423 = vmax.f32 %v359, 0.0
        %v424 = vmax.f32 %v361, 0.0
        %v425 = vmax.f32 %v364, 0.0
        %v426 = vmax.f32 %v366, 0.0
        %v427 = vmax.f32 %v369, 0.0
        %v428 = vmax.f32 %v371, 0.0
        %v429 = vmax.f32 %v374, 0.0
        %v430 = vmax.f32 %v376, 0.0
        %v431 = vmax.f32 %v379, 0.0
        %v432 = vmax.f32 %v381, 0.0
        %v433 = vmax.f32 %v384, 0.0
        %v434 = vmax.f32 %v386, 0.0
        %v435 = vmax.f32 %v389, 0.0
        %v436 = vmax.f32 %v391, 0.0
        %v437 = vmax.f32 %v394, 0.0
        %v438 = vmax.f32 %v396, 0.0
        %v439 = vmax.f32 %v399, 0.0
        %v440 = vmax.f32 %v401, 0.0
        %v441 = vmax.f32 %v404, 0.0
        %v442 = vmax.f32 %v406, 0.0
        %v443 = vmax.f32 %v409, 0.0
        %v444 = vmax.f32 %v411, 0.0
        %v445 = vpack.c.bf16 %v414, %v413
        %v446 = vpack.c.bf16 %v416, %v415
        %v447 = vpack.c.bf16 %v418, %v417
        %v448 = vpack.c.bf16 %v420, %v419
        %v449 = vpack.c.bf16 %v422, %v421
        %v450 = vpack.c.bf16 %v424, %v423
        %v451 = vpack.c.bf16 %v426, %v425
        %v452 = vpack.c.bf16 %v428, %v427
        %v453 = vpack.c.bf16 %v430, %v429
        %v454 = vpack.c.bf16 %v432, %v431
        %v455 = vpack.c.bf16 %v434, %v433
        %v456 = vpack.c.bf16 %v436, %v435
        %v457 = vpack.c.bf16 %v438, %v437
        %v458 = vpack.c.bf16 %v440, %v439
        %v459 = vpack.c.bf16 %v442, %v441
        %v460 = vpack.c.bf16 %v444, %v443
        %s461 = scalar_lea.vmem %s1, 64
        %v462 = vld [vmem:[%s461] sm:$0xf]
        %v463 = vld [vmem:[%s461 + $0x4] sm:$0xf]
        %v464 = vld [vmem:[%s461 + $0x8] sm:$0xf]
        %v465 = vld [vmem:[%s461 + $0xc] sm:$0xf]
        %v466 = vld [vmem:[%s461 + $0x10] sm:$0xf]
        %v467 = vld [vmem:[%s461 + $0x14] sm:$0xf]
        %v468 = vld [vmem:[%s461 + $0x18] sm:$0xf]
        %v469 = vld [vmem:[%s461 + $0x1c] sm:$0xf]
        %v470 = vld [vmem:[%s461 + $0x20] sm:$0xf]
        %v471 = vld [vmem:[%s461 + $0x24] sm:$0xf]
        %v472 = vld [vmem:[%s461 + $0x28] sm:$0xf]
        %v473 = vld [vmem:[%s461 + $0x2c] sm:$0xf]
        %v474 = vld [vmem:[%s461 + $0x30] sm:$0xf]
        %v475 = vld [vmem:[%s461 + $0x34] sm:$0xf]
        %v476 = vld [vmem:[%s461 + $0x38] sm:$0xf]
        %v477 = vld [vmem:[%s461 + $0x3c] sm:$0xf]
        %s478 = scalar_lea.vmem %s2, 1
        %v479 = vld [vmem:[%s478] sm:$0x1]
        %v481 = vperm.slane %v479, 0
        %v499 = vunpack.c.l.b16 %v462
        %v500 = vunpack.c.l.b16 %v463
        %v501 = vunpack.c.l.b16 %v464
        %v502 = vunpack.c.l.b16 %v465
        %v503 = vunpack.c.l.b16 %v466
        %v504 = vunpack.c.l.b16 %v467
        %v505 = vunpack.c.l.b16 %v468
        %v506 = vunpack.c.l.b16 %v469
        %v507 = vunpack.c.l.b16 %v470
        %v508 = vunpack.c.l.b16 %v471
        %v509 = vunpack.c.l.b16 %v472
        %v510 = vunpack.c.l.b16 %v473
        %v511 = vunpack.c.l.b16 %v474
        %v512 = vunpack.c.l.b16 %v475
        %v513 = vunpack.c.l.b16 %v476
        %v514 = vunpack.c.l.b16 %v477
        %v515 = vpack.c.b16 %v500, %v499
        %v516 = vpack.c.b16 %v502, %v501
        %v517 = vpack.c.b16 %v504, %v503
        %v518 = vpack.c.b16 %v506, %v505
        %v519 = vpack.c.b16 %v508, %v507
        %v520 = vpack.c.b16 %v510, %v509
        %v521 = vpack.c.b16 %v512, %v511
        %v522 = vpack.c.b16 %v514, %v513
        %531 = vmatpush.bf16.msra.mxu0 %v522
        %532 = vmatpush.bf16.msra.mxu0 %v521
        %533 = vmatpush.bf16.msra.mxu0 %v520
        %534 = vmatpush.bf16.msra.mxu0 %v519
        %535 = vmatpush.bf16.msra.mxu0 %v518
        %536 = vmatpush.bf16.msra.mxu0 %v517
        %537 = vmatpush.bf16.msra.mxu0 %v516
        %538 = vmatpush.bf16.msra.mxu0 %v515
        %539 = vmatmul.bf16.gmra.mxu0 %v445
        %v540 = vpop.f32.mrf.mxu0
        %v541 = vadd.f32 %v481, %v540
        %v542 = vpop.f32.mrf.mxu0
        %v543 = vadd.f32 %v481, %v542
        %544 = vmatmul.bf16.gmra.mxu0 %v446
        %v545 = vpop.f32.mrf.mxu0
        %v546 = vadd.f32 %v481, %v545
        %v547 = vpop.f32.mrf.mxu0
        %v548 = vadd.f32 %v481, %v547
        %549 = vmatmul.bf16.gmra.mxu0 %v447
        %v550 = vpop.f32.mrf.mxu0
        %v551 = vadd.f32 %v481, %v550
        %v552 = vpop.f32.mrf.mxu0
        %v553 = vadd.f32 %v481, %v552
        %554 = vmatmul.bf16.gmra.mxu0 %v448
        %v555 = vpop.f32.mrf.mxu0
        %v556 = vadd.f32 %v481, %v555
        %v557 = vpop.f32.mrf.mxu0
        %v558 = vadd.f32 %v481, %v557
        %559 = vmatmul.bf16.gmra.mxu0 %v449
        %v560 = vpop.f32.mrf.mxu0
        %v561 = vadd.f32 %v481, %v560
        %v562 = vpop.f32.mrf.mxu0
        %v563 = vadd.f32 %v481, %v562
        %564 = vmatmul.bf16.gmra.mxu0 %v450
        %v565 = vpop.f32.mrf.mxu0
        %v566 = vadd.f32 %v481, %v565
        %v567 = vpop.f32.mrf.mxu0
        %v568 = vadd.f32 %v481, %v567
        %569 = vmatmul.bf16.gmra.mxu0 %v451
        %v570 = vpop.f32.mrf.mxu0
        %v571 = vadd.f32 %v481, %v570
        %v572 = vpop.f32.mrf.mxu0
        %v573 = vadd.f32 %v481, %v572
        %574 = vmatmul.bf16.gmra.mxu0 %v452
        %v575 = vpop.f32.mrf.mxu0
        %v576 = vadd.f32 %v481, %v575
        %v577 = vpop.f32.mrf.mxu0
        %v578 = vadd.f32 %v481, %v577
        %579 = vmatmul.bf16.gmra.mxu0 %v453
        %v580 = vpop.f32.mrf.mxu0
        %v581 = vadd.f32 %v481, %v580
        %v582 = vpop.f32.mrf.mxu0
        %v583 = vadd.f32 %v481, %v582
        %584 = vmatmul.bf16.gmra.mxu0 %v454
        %v585 = vpop.f32.mrf.mxu0
        %v586 = vadd.f32 %v481, %v585
        %v587 = vpop.f32.mrf.mxu0
        %v588 = vadd.f32 %v481, %v587
        %589 = vmatmul.bf16.gmra.mxu0 %v455
        %v590 = vpop.f32.mrf.mxu0
        %v591 = vadd.f32 %v481, %v590
        %v592 = vpop.f32.mrf.mxu0
        %v593 = vadd.f32 %v481, %v592
        %594 = vmatmul.bf16.gmra.mxu0 %v456
        %v595 = vpop.f32.mrf.mxu0
        %v596 = vadd.f32 %v481, %v595
        %v597 = vpop.f32.mrf.mxu0
        %v598 = vadd.f32 %v481, %v597
        %599 = vmatmul.bf16.gmra.mxu0 %v457
        %v600 = vpop.f32.mrf.mxu0
        %v601 = vadd.f32 %v481, %v600
        %v602 = vpop.f32.mrf.mxu0
        %v603 = vadd.f32 %v481, %v602
        %604 = vmatmul.bf16.gmra.mxu0 %v458
        %v605 = vpop.f32.mrf.mxu0
        %v606 = vadd.f32 %v481, %v605
        %v607 = vpop.f32.mrf.mxu0
        %v608 = vadd.f32 %v481, %v607
        %609 = vmatmul.bf16.gmra.mxu0 %v459
        %v610 = vpop.f32.mrf.mxu0
        %v611 = vadd.f32 %v481, %v610
        %v612 = vpop.f32.mrf.mxu0
        %v613 = vadd.f32 %v481, %v612
        %614 = vmatmul.bf16.gmra.mxu0 %v460
        %v615 = vpop.f32.mrf.mxu0
        %v616 = vadd.f32 %v481, %v615
        %v617 = vpop.f32.mrf.mxu0
        %v618 = vadd.f32 %v481, %v617
        %619 = vdwg.mxu0
        %v620 = vmax.f32 %v541, 0.0
        %v621 = vmax.f32 %v543, 0.0
        %v622 = vmax.f32 %v546, 0.0
        %v623 = vmax.f32 %v548, 0.0
        %v624 = vmax.f32 %v551, 0.0
        %v625 = vmax.f32 %v553, 0.0
        %v626 = vmax.f32 %v556, 0.0
        %v627 = vmax.f32 %v558, 0.0
        %v628 = vmax.f32 %v561, 0.0
        %v629 = vmax.f32 %v563, 0.0
        %v630 = vmax.f32 %v566, 0.0
        %v631 = vmax.f32 %v568, 0.0
        %v632 = vmax.f32 %v571, 0.0
        %v633 = vmax.f32 %v573, 0.0
        %v634 = vmax.f32 %v576, 0.0
        %v635 = vmax.f32 %v578, 0.0
        %v636 = vmax.f32 %v581, 0.0
        %v637 = vmax.f32 %v583, 0.0
        %v638 = vmax.f32 %v586, 0.0
        %v639 = vmax.f32 %v588, 0.0
        %v640 = vmax.f32 %v591, 0.0
        %v641 = vmax.f32 %v593, 0.0
        %v642 = vmax.f32 %v596, 0.0
        %v643 = vmax.f32 %v598, 0.0
        %v644 = vmax.f32 %v601, 0.0
        %v645 = vmax.f32 %v603, 0.0
        %v646 = vmax.f32 %v606, 0.0
        %v647 = vmax.f32 %v608, 0.0
        %v648 = vmax.f32 %v611, 0.0
        %v649 = vmax.f32 %v613, 0.0
        %v650 = vmax.f32 %v616, 0.0
        %v651 = vmax.f32 %v618, 0.0
        %v652 = vpack.c.bf16 %v620, %v620
        %v653 = vpack.c.bf16 %v621, %v621
        %v654 = vpack.c.bf16 %v622, %v622
        %v655 = vpack.c.bf16 %v623, %v623
        %v656 = vpack.c.bf16 %v624, %v624
        %v657 = vpack.c.bf16 %v625, %v625
        %v658 = vpack.c.bf16 %v626, %v626
        %v659 = vpack.c.bf16 %v627, %v627
        %v660 = vpack.c.bf16 %v628, %v628
        %v661 = vpack.c.bf16 %v629, %v629
        %v662 = vpack.c.bf16 %v630, %v630
        %v663 = vpack.c.bf16 %v631, %v631
        %v664 = vpack.c.bf16 %v632, %v632
        %v665 = vpack.c.bf16 %v633, %v633
        %v666 = vpack.c.bf16 %v634, %v634
        %v667 = vpack.c.bf16 %v635, %v635
        %v668 = vpack.c.bf16 %v636, %v636
        %v669 = vpack.c.bf16 %v637, %v637
        %v670 = vpack.c.bf16 %v638, %v638
        %v671 = vpack.c.bf16 %v639, %v639
        %v672 = vpack.c.bf16 %v640, %v640
        %v673 = vpack.c.bf16 %v641, %v641
        %v674 = vpack.c.bf16 %v642, %v642
        %v675 = vpack.c.bf16 %v643, %v643
        %v676 = vpack.c.bf16 %v644, %v644
        %v677 = vpack.c.bf16 %v645, %v645
        %v678 = vpack.c.bf16 %v646, %v646
        %v679 = vpack.c.bf16 %v647, %v647
        %v680 = vpack.c.bf16 %v648, %v648
        %v681 = vpack.c.bf16 %v649, %v649
        %v682 = vpack.c.bf16 %v650, %v650
        %v683 = vpack.c.bf16 %v651, %v651
        %684 = vst [vmem:[%s197] sm:$0xf] %v652
        %685 = vst [vmem:[%s197 + $0x4] sm:$0xf] %v653
        %686 = vst [vmem:[%s197 + $0x8] sm:$0xf] %v654
        %687 = vst [vmem:[%s197 + $0xc] sm:$0xf] %v655
        %688 = vst [vmem:[%s197 + $0x10] sm:$0xf] %v656
        %689 = vst [vmem:[%s197 + $0x14] sm:$0xf] %v657
        %690 = vst [vmem:[%s197 + $0x18] sm:$0xf] %v658
        %691 = vst [vmem:[%s197 + $0x1c] sm:$0xf] %v659
        %692 = vst [vmem:[%s197 + $0x20] sm:$0xf] %v660
        %693 = vst [vmem:[%s197 + $0x24] sm:$0xf] %v661
        %694 = vst [vmem:[%s197 + $0x28] sm:$0xf] %v662
        %695 = vst [vmem:[%s197 + $0x2c] sm:$0xf] %v663
        %696 = vst [vmem:[%s197 + $0x30] sm:$0xf] %v664
        %697 = vst [vmem:[%s197 + $0x34] sm:$0xf] %v665
        %698 = vst [vmem:[%s197 + $0x38] sm:$0xf] %v666
        %699 = vst [vmem:[%s197 + $0x3c] sm:$0xf] %v667
        %700 = vst [vmem:[%s197 + $0x40] sm:$0xf] %v668
        %701 = vst [vmem:[%s197 + $0x44] sm:$0xf] %v669
        %702 = vst [vmem:[%s197 + $0x48] sm:$0xf] %v670
        %703 = vst [vmem:[%s197 + $0x4c] sm:$0xf] %v671
        %704 = vst [vmem:[%s197 + $0x50] sm:$0xf] %v672
        %705 = vst [vmem:[%s197 + $0x54] sm:$0xf] %v673
        %706 = vst [vmem:[%s197 + $0x58] sm:$0xf] %v674
        %707 = vst [vmem:[%s197 + $0x5c] sm:$0xf] %v675
        %708 = vst [vmem:[%s197 + $0x60] sm:$0xf] %v676
        %709 = vst [vmem:[%s197 + $0x64] sm:$0xf] %v677
        %710 = vst [vmem:[%s197 + $0x68] sm:$0xf] %v678
        %711 = vst [vmem:[%s197 + $0x6c] sm:$0xf] %v679
        %712 = vst [vmem:[%s197 + $0x70] sm:$0xf] %v680
        %713 = vst [vmem:[%s197 + $0x74] sm:$0xf] %v681
        %714 = vst [vmem:[%s197 + $0x78] sm:$0xf] %v682
        %715 = vst [vmem:[%s197 + $0x7c] sm:$0xf] %v683
        %s716 = sand.u32 %s96, 1
        %s717 = scalar_lea.sflag [#allocation4], %s716
        %s718 = sand.u32 %s96, 1
        %s719 = smul.addr %s718, 128
        %s720 = scalar_lea.vmem [#allocation5], %s719
        // Predicated region
        $region37: #{_encoder_forward.2} parent=31 // pred_check
          %p721 = pneg %p106
        $region38: #{_encoder_forward.2} parent=31 // pred_check_branch
          %723 = sbr.rel (%p721) target = $region40
        $region39: #{_encoder_forward.2} parent=31 // pred_region
          %s724 = smul.u32 32, %s20
          %s725 = ssub.s32 63, %s724
          %p726 = scmp.lt.s32.totalorder %s725, 32
          %s727 = scalar_select %p726, %s725, 32
          %s728 = smul.u32 4, %s727
          %s729 = ssub.s32 128, %s728
          %s730 = sshll.u32 %s729, 4
          %731 = vsyncadd %s717, %s730
          %p732 = scmp.ne.s32.totalorder 0, %s728
          %s733 = smul.addr %s724, 4
          %s734 = scalar_lea.hbm %s3, %s733
          %s735 = smul.u32 4, %s727
          %s736 = sshll.u32 %s720, 4
          %s737 = int_to_ptr.vmem [resolvable:$true] %s736
          %s738 = sshll.u32 %s734, 4
          %s739 = int_to_ptr.hbm [resolvable:$true] %s738
          %s740 = sshll.u32 %s735, 4
          %744 = dma.vmem_to_hbm [thread:$0]  (%p732), %s737, %s740, %s739, %s717, 64, 64, 4
        $region40: #{_encoder_forward.2} parent=31 // pred_fallthru
          _
      $region32: #{_encoder_forward.2} parent=5 // pred_fallthru
        _
      %p745 = scmp.le.s32.totalorder 2, %s15
      // Predicated region
      $region41: #{_encoder_forward.2} parent=5 // pred_check
        %p746 = pneg %p745
      $region42: #{_encoder_forward.2} parent=5 // pred_check_branch
        %748 = sbr.rel (%p746) target = $region44
      $region43: #{_encoder_forward.2} parent=5 // pred_region
        %s749 = ssub.s32 %s15, 2
        // Predicated region
        $region45: #{_encoder_forward.2} parent=43 // pred_check
          %p750 = pneg %p112
        $region46: #{_encoder_forward.2} parent=43 // pred_check_branch
          %752 = sbr.rel (%p750) target = $region48
        $region47: #{_encoder_forward.2} parent=43 // pred_region
          %s753 = sand.u32 %s97, 1
          %s754 = scalar_lea.sflag [#allocation4], %s753
          %s755 = sand.u32 %s97, 1
          %s756 = smul.addr %s755, 128
          %s757 = scalar_lea.vmem [#allocation5], %s756
          %759 = dma.done %s754, 2048
        $region48: #{_encoder_forward.2} parent=43 // pred_fallthru
          _
      $region44: #{_encoder_forward.2} parent=5 // pred_fallthru
        _
    $region6: #{_encoder_forward.2} parent=1 // loop_footer
      %s19 = sadd.s32 1, %s15
    $region7: #{_encoder_forward.2} parent=1 // loop_footer_branch
      %14 = sbr.rel target = $region3
    $region8: #{_encoder_forward.2} parent=1 // loop_exit
      _
    %760 = vsyncpa [#allocation3], 1
    %s761 = scalar_lea.sflag [#allocation3], 1
    %762 = vsyncpa %s761, 1
    %763 = vsyncpa [#allocation4], 1
    %s764 = scalar_lea.sflag [#allocation4], 1
    %765 = vsyncpa %s764, 1

</llo_original>
